<compile_context>
chip_gen: v6e
topology: v6e:2x2x1
jax: 0.10.0
libtpu: 0.0.40
codegen_flags: <defaults>
</compile_context>

<pallas_src>
import jax
import jax.numpy as jnp
from jax.experimental import pallas as pl
from jax.experimental.pallas import tpu as pltpu

NUM_ANCHORS = 3
NUM_CLASSES = 8
CONF_ROW = 4                       # field index of the objectness logit
DEFAULT_ANCHORS = [[[10, 13], [16, 30], [33, 23]],
                   [[30, 61], [62, 45], [59, 119]],
                   [[116, 90], [156, 198], [373, 326]]]


def _bce_logits(z, t):
    """BCE(sigmoid(z), t) in the numerically stable softplus form."""
    # TODO(synk): nn.BCELoss clamps log() at -100; this logit form only differs
    # for |z| large enough that sigmoid saturates in f32 (|z| > ~17).
    return jnp.maximum(z, 0.0) - z * t + jnp.log(1.0 + jnp.exp(-jnp.abs(z)))


# ----------------------------- Pallas kernel -------------------------------- #
def _dense_noobj_conf_sums(pred_views):
    """Per-scale sum over ALL cells of BCE(sigmoid(conf_logit), 0).

    pred_views: list of (B, 3, 13, gh, gw) contiguous views of the raw NCHW
    prediction tensors.  Single pallas_call, grid over batch; only the
    confidence plane of each batch element is DMA'd from HBM.
    """
    num_scales = len(pred_views)
    batch = pred_views[0].shape[0]

    def kernel(*refs):
        pred_refs = refs[:num_scales]
        acc_refs = refs[num_scales:]
        b = pl.program_id(0)

        @pl.when(b == 0)
        def _init():
            for acc in acc_refs:
                acc[...] = jnp.zeros_like(acc)

        for p_ref, acc in zip(pred_refs, acc_refs):
            z = p_ref[...].astype(jnp.float32)          # (3, gh, gw) conf logits
            # softplus(z) == BCE(sigmoid(z), 0); one grouped VPU/EUP op per scale.
            acc[...] += jnp.maximum(z, 0.0) + jnp.log(1.0 + jnp.exp(-jnp.abs(z)))

    in_specs = []
    out_specs = []
    out_shapes = []
    for p in pred_views:
        _, num_a, _, gh, gw = p.shape
        # Only field CONF_ROW of batch element b is fetched (block size 1 on the
        # squeezed batch/field dims; full (gh, gw) spatial block -> no padding).
        in_specs.append(
            pl.BlockSpec((None, num_a, None, gh, gw),
                         lambda b: (b, 0, CONF_ROW, 0, 0)))
        out_specs.append(pl.BlockSpec((num_a, gh, gw), lambda b: (0, 0, 0)))
        out_shapes.append(jax.ShapeDtypeStruct((num_a, gh, gw), jnp.float32))

    accs = pl.pallas_call(
        kernel,
        grid=(batch,),
        in_specs=in_specs,
        out_specs=tuple(out_specs),
        out_shape=tuple(out_shapes),
        compiler_params=pltpu.CompilerParams(
            dimension_semantics=("arbitrary",)),   # accumulators are revisited
    )(*pred_views)

    return [jnp.sum(a) for a in accs]      # tiny XLA reductions over (3, gh, gw)


# -------------------------------- wrapper ------------------------------------ #
def yolo_loss(predictions, targets, input_dim, anchors=None, num_classes=NUM_CLASSES):
    if anchors is None:
        anchors = DEFAULT_ANCHORS
    num_targets = targets.shape[0]
    if num_targets == 0:
        return jnp.float32(0.0)

    in_w, in_h = float(input_dim[0]), float(input_dim[1])
    num_fields = num_classes + 5

    # Free contiguous views of the raw NCHW predictions (no data movement).
    pred_views = [p.reshape(p.shape[0], NUM_ANCHORS, num_fields, p.shape[2], p.shape[3])
                  for p in predictions]

    dense_noobj = _dense_noobj_conf_sums(pred_views)

    tb = targets[:, 0].astype(jnp.int32)
    tc = targets[:, 1].astype(jnp.int32)
    onehot = jax.nn.one_hot(tc, num_classes, dtype=jnp.float32)          # (T, C)
    later = jnp.arange(num_targets)[None, :] > jnp.arange(num_targets)[:, None]

    total = jnp.float32(0.0)
    for i, p in enumerate(pred_views):
        batch, _, _, gh, gw = p.shape
        n_cells = gh * gw
        anchors_px = jnp.asarray(anchors[i], jnp.float32)                # (3, 2)

        gx = targets[:, 2] * gw
        gy = targets[:, 3] * gh
        gw_t = targets[:, 4] * in_w
        gh_t = targets[:, 5] * in_h
        gi = jnp.clip(gx.astype(jnp.int32), 0, gw - 1)
        gj = jnp.clip(gy.astype(jnp.int32), 0, gh - 1)

        # Best anchor by width/height IoU (same arithmetic as the PyTorch loop:
        # anchor_wh reduces to [anchor_w_px * gw, anchor_h_px * gh]).
        aw = anchors_px[:, 0] * gw
        ah = anchors_px[:, 1] * gh
        inter = (jnp.minimum(gw_t[:, None], aw[None, :])
                 * jnp.minimum(gh_t[:, None], ah[None, :]))
        union = (gw_t * gh_t)[:, None] + (aw * ah)[None, :] - inter + 1e-16
        best = jnp.argmax(inter / union, axis=1).astype(jnp.int32)       # (T,)

        # Regression targets each target would write at its cell.
        t_x = gx - gi.astype(jnp.float32)
        t_y = gy - gj.astype(jnp.float32)
        t_w = jnp.log(gw_t / anchors_px[best, 0] + 1e-16)
        t_h = jnp.log(gh_t / anchors_px[best, 1] + 1e-16)

        # Flat cell index over (B, A, gh, gw) -- encodes the batch, so cell
        # collisions only happen within a batch, exactly like the PyTorch loop.
        cell = gj * gw + gi
        idx = (tb * NUM_ANCHORS + best) * n_cells + cell                 # (T,)

        same = idx[:, None] == idx[None, :]                              # (T, T)
        live = jnp.logical_not(jnp.any(same & later, axis=1))            # last write wins
        live_f = live.astype(jnp.float32)
        n_obj = jnp.sum(live_f)
        n_noobj = jnp.float32(batch * NUM_ANCHORS * n_cells) - n_obj

        # Class-bit OR across every target writing the same cell.
        t_cls = jnp.minimum(same.astype(jnp.float32) @ onehot, 1.0)      # (T, C)

        # Gather the 13 raw prediction fields at each target's cell (tiny gather).
        field = jnp.arange(num_fields, dtype=jnp.int32)
        offs = (((tb * NUM_ANCHORS + best)[:, None] * num_fields + field[None, :])
                * n_cells + cell[:, None])                               # (T, 13)
        pv = jnp.take(p.reshape(-1), offs.reshape(-1)).reshape(
            num_targets, num_fields).astype(jnp.float32)

        p_x = jax.nn.sigmoid(pv[:, 0])
        p_y = jax.nn.sigmoid(pv[:, 1])
        p_w = pv[:, 2]
        p_h = pv[:, 3]
        z_conf = pv[:, 4]
        z_cls = pv[:, 5:5 + num_classes]

        sse = jnp.sum(live_f * ((p_x - t_x) ** 2 + (p_y - t_y) ** 2
                                + (p_w - t_w) ** 2 + (p_h - t_h) ** 2))

        conf_obj_sum = jnp.sum(live_f * _bce_logits(z_conf, 1.0))
        # Dense kernel summed BCE(conf, 0) over ALL cells; remove the obj cells.
        conf_noobj_sum = dense_noobj[i] - jnp.sum(live_f * _bce_logits(z_conf, 0.0))

        cls_sum = jnp.sum(live_f[:, None] * _bce_logits(z_cls, t_cls))

        # Means exactly as nn.MSELoss / nn.BCELoss over the masked selections.
        # Only loss_cls is guarded (as in the PyTorch module); n_obj >= 1 always
        # holds when targets exist because every target is assigned at every scale.
        loss_box = sse / n_obj
        loss_conf = conf_obj_sum / n_obj + 0.5 * conf_noobj_sum / n_noobj
        loss_cls = jnp.where(n_obj > 0, cls_sum / (n_obj * num_classes),
                             jnp.float32(0.0))
        total = total + loss_box + loss_conf + loss_cls
    return total


# ------------------------- pure-JAX reference (check) ------------------------ #
def _bce_ref(p, t):
    # PyTorch nn.BCELoss element: -(t*log(p) + (1-t)*log(1-p)), logs clamped at -100.
    logp = jnp.maximum(jnp.log(p), -100.0)
    log1mp = jnp.maximum(jnp.log(1.0 - p), -100.0)
    return -(t * logp + (1.0 - t) * log1mp)


def _build_targets_ref(targets, grid_h, grid_w, input_dim, anchors_px, batch_size,
                       num_classes):
    shape = (batch_size, NUM_ANCHORS, grid_h, grid_w)
    obj = jnp.zeros(shape, jnp.float32)
    noobj = jnp.ones(shape, jnp.float32)
    tx = jnp.zeros(shape, jnp.float32)
    ty = jnp.zeros(shape, jnp.float32)
    tw = jnp.zeros(shape, jnp.float32)
    th = jnp.zeros(shape, jnp.float32)
    tconf = jnp.zeros(shape, jnp.float32)
    tcls = jnp.zeros(shape + (num_classes,), jnp.float32)

    in_w, in_h = float(input_dim[0]), float(input_dim[1])
    anchor_wh = jnp.stack([anchors_px[:, 0] * grid_w, anchors_px[:, 1] * grid_h], axis=1)

    for t in range(targets.shape[0]):
        b = targets[t, 0].astype(jnp.int32)
        c = targets[t, 1].astype(jnp.int32)
        gx = targets[t, 2] * grid_w
        gy = targets[t, 3] * grid_h
        gw_t = targets[t, 4] * in_w
        gh_t = targets[t, 5] * in_h
        gi = jnp.clip(gx.astype(jnp.int32), 0, grid_w - 1)
        gj = jnp.clip(gy.astype(jnp.int32), 0, grid_h - 1)
        inter = jnp.minimum(gw_t, anchor_wh[:, 0]) * jnp.minimum(gh_t, anchor_wh[:, 1])
        union = gw_t * gh_t + anchor_wh[:, 0] * anchor_wh[:, 1] - inter + 1e-16
        best = jnp.argmax(inter / union)
        obj = obj.at[b, best, gj, gi].set(1.0)
        noobj = noobj.at[b, best, gj, gi].set(0.0)
        tx = tx.at[b, best, gj, gi].set(gx - gi.astype(jnp.float32))
        ty = ty.at[b, best, gj, gi].set(gy - gj.astype(jnp.float32))
        tw = tw.at[b, best, gj, gi].set(jnp.log(gw_t / anchors_px[best, 0] + 1e-16))
        th = th.at[b, best, gj, gi].set(jnp.log(gh_t / anchors_px[best, 1] + 1e-16))
        tconf = tconf.at[b, best, gj, gi].set(1.0)
        tcls = tcls.at[b, best, gj, gi, c].set(1.0)
    return obj, noobj, tx, ty, tw, th, tconf, tcls


def yolo_loss_reference(predictions, targets, input_dim, anchors=None,
                        num_classes=NUM_CLASSES):
    if anchors is None:
        anchors = DEFAULT_ANCHORS
    if targets.shape[0] == 0:
        return jnp.float32(0.0)
    total = jnp.float32(0.0)
    for i, pred in enumerate(predictions):
        B, _, gh, gw = pred.shape
        p = jnp.transpose(pred.reshape(B, NUM_ANCHORS, num_classes + 5, gh, gw),
                          (0, 1, 3, 4, 2)).astype(jnp.float32)
        x = jax.nn.sigmoid(p[..., 0]); y = jax.nn.sigmoid(p[..., 1])
        w = p[..., 2]; h = p[..., 3]
        conf = jax.nn.sigmoid(p[..., 4]); cls = jax.nn.sigmoid(p[..., 5:])
        anchors_px = jnp.asarray(anchors[i], jnp.float32)
        obj, noobj, tx, ty, tw, th, tconf, tcls = _build_targets_ref(
            targets, gh, gw, input_dim, anchors_px, B, num_classes)
        n_obj = jnp.sum(obj); n_noobj = jnp.sum(noobj)
        mse = lambda v, t: jnp.sum(obj * (v - t) ** 2) / n_obj
        bconf = _bce_ref(conf, tconf)
        loss_conf = jnp.sum(obj * bconf) / n_obj + 0.5 * jnp.sum(noobj * bconf) / n_noobj
        loss_cls = jnp.where(
            n_obj > 0,
            jnp.sum(obj[..., None] * _bce_ref(cls, tcls)) / (n_obj * num_classes),
            jnp.float32(0.0))
        total = (total + mse(x, tx) + mse(y, ty) + mse(w, tw) + mse(h, th)
                 + loss_conf + loss_cls)
    return total


if __name__ == "__main__":
    key = jax.random.PRNGKey(0)
    kb, kc, kxy, kwh, kp = jax.random.split(key, 5)

    # targets: [batch_idx, class, x, y, w, h]  (x,y,w,h normalized to [0,1])
    T = 6
    b_idx = jax.random.randint(kb, (T,), 0, 2).astype(jnp.float32)
    cls_t = jax.random.randint(kc, (T,), 0, NUM_CLASSES).astype(jnp.float32)
    xy = jax.random.uniform(kxy, (T, 2), minval=0.05, maxval=0.95)
    wh = jax.random.uniform(kwh, (T, 2), minval=0.05, maxval=0.5)
    targets = jnp.concatenate([b_idx[:, None], cls_t[:, None], xy, wh], axis=1)

    # three detection scales, NCHW, channels = 3 * (num_classes + 5) = 39
    C = NUM_ANCHORS * (NUM_CLASSES + 5)
    shapes = [(2, C, 4, 4), (2, C, 8, 8), (2, C, 16, 16)]
    pkeys = jax.random.split(kp, 3)
    predictions = [jax.random.normal(k, s, dtype=jnp.float32)
                   for k, s in zip(pkeys, shapes)]
    input_dim = (128, 128)

    loss = jax.block_until_ready(yolo_loss(predictions, targets, input_dim))
    ref = jax.block_until_ready(yolo_loss_reference(predictions, targets, input_dim))

    assert jnp.isfinite(loss), "kernel produced non-finite loss"
    assert jnp.allclose(loss, ref, rtol=1e-3, atol=1e-3), (loss, ref)

    print("KERNEL_OK")
</pallas_src>

<mosaic_0001>
module attributes {stable_mosaic.version = 11 : i64} {
  func.func @kernel(%arg0: i32, %arg1: memref<1x3x1x4x4xf32, #tpu.memory_space<vmem>>, %arg2: memref<1x3x1x8x8xf32, #tpu.memory_space<vmem>>, %arg3: memref<1x3x1x16x16xf32, #tpu.memory_space<vmem>>, %arg4: memref<3x4x4xf32, #tpu.memory_space<vmem>>, %arg5: memref<3x8x8xf32, #tpu.memory_space<vmem>>, %arg6: memref<3x16x16xf32, #tpu.memory_space<vmem>>) attributes {dimension_semantics = [#tpu.dimension_semantics<arbitrary>], iteration_bounds = array<i64: 2>, scalar_prefetch = 0 : i64, scratch_operands = 0 : i64, tpu.core_type = #tpu.core_type<tc>, window_params = [{transform_indices = @transform_0, window_bounds = array<i64: 1, 3, 1, 4, 4>}, {transform_indices = @transform_1, window_bounds = array<i64: 1, 3, 1, 8, 8>}, {transform_indices = @transform_2, window_bounds = array<i64: 1, 3, 1, 16, 16>}, {pipeline_mode = #tpu.pipeline_mode<synchronous>, transform_indices = @transform_3, window_bounds = array<i64: 3, 4, 4>}, {pipeline_mode = #tpu.pipeline_mode<synchronous>, transform_indices = @transform_4, window_bounds = array<i64: 3, 8, 8>}, {pipeline_mode = #tpu.pipeline_mode<synchronous>, transform_indices = @transform_5, window_bounds = array<i64: 3, 16, 16>}]} {
    %c0_i32 = arith.constant 0 : i32
    %0 = arith.cmpi eq, %arg0, %c0_i32 : i32
    %1 = arith.extui %0 : i1 to i32
    %c0_i32_0 = arith.constant 0 : i32
    %2 = arith.cmpi ne, %1, %c0_i32_0 : i32
    scf.if %2 {
      %cst_41 = arith.constant 0.000000e+00 : f32
      %48 = vector.broadcast %cst_41 : f32 to vector<3x4x4xf32>
      %c0_42 = arith.constant 0 : index
      %c0_43 = arith.constant 0 : index
      %c0_44 = arith.constant 0 : index
      %49 = vector.load %arg4[%c0_42, %c0_43, %c0_44] : memref<3x4x4xf32, #tpu.memory_space<vmem>>, vector<3x4x4xf32>
      tpu.vector_store %arg4[%c0_42, %c0_43, %c0_44], %48 {strides = array<i32>} : memref<3x4x4xf32, #tpu.memory_space<vmem>>, vector<3x4x4xf32>,
      %cst_45 = arith.constant 0.000000e+00 : f32
      %50 = vector.broadcast %cst_45 : f32 to vector<3x8x8xf32>
      %c0_46 = arith.constant 0 : index
      %c0_47 = arith.constant 0 : index
      %c0_48 = arith.constant 0 : index
      %51 = vector.load %arg5[%c0_46, %c0_47, %c0_48] : memref<3x8x8xf32, #tpu.memory_space<vmem>>, vector<3x8x8xf32>
      tpu.vector_store %arg5[%c0_46, %c0_47, %c0_48], %50 {strides = array<i32>} : memref<3x8x8xf32, #tpu.memory_space<vmem>>, vector<3x8x8xf32>,
      %cst_49 = arith.constant 0.000000e+00 : f32
      %52 = vector.broadcast %cst_49 : f32 to vector<3x16x16xf32>
      %c0_50 = arith.constant 0 : index
      %c0_51 = arith.constant 0 : index
      %c0_52 = arith.constant 0 : index
      %53 = vector.load %arg6[%c0_50, %c0_51, %c0_52] : memref<3x16x16xf32, #tpu.memory_space<vmem>>, vector<3x16x16xf32>
      tpu.vector_store %arg6[%c0_50, %c0_51, %c0_52], %52 {strides = array<i32>} : memref<3x16x16xf32, #tpu.memory_space<vmem>>, vector<3x16x16xf32>,
    } else {
    }
    %c0 = arith.constant 0 : index
    %c0_1 = arith.constant 0 : index
    %c0_2 = arith.constant 0 : index
    %c0_3 = arith.constant 0 : index
    %c0_4 = arith.constant 0 : index
    %3 = vector.load %arg1[%c0, %c0_1, %c0_2, %c0_3, %c0_4] : memref<1x3x1x4x4xf32, #tpu.memory_space<vmem>>, vector<1x3x1x4x4xf32>
    %4 = vector.shape_cast %3 : vector<1x3x1x4x4xf32> to vector<3x4x4xf32>
    %c0_5 = arith.constant 0 : index
    %c0_6 = arith.constant 0 : index
    %c0_7 = arith.constant 0 : index
    %5 = vector.load %arg4[%c0_5, %c0_6, %c0_7] : memref<3x4x4xf32, #tpu.memory_space<vmem>>, vector<3x4x4xf32>
    %cst = arith.constant 0.000000e+00 : f32
    %6 = vector.broadcast %cst : f32 to vector<3x4x4xf32>
    %7 = arith.maximumf %4, %6 : vector<3x4x4xf32>
    %8 = math.absf %4 : vector<3x4x4xf32>
    %cst_8 = arith.constant 0.000000e+00 : f32
    %9 = vector.broadcast %cst_8 : f32 to vector<3x4x4xf32>
    %10 = arith.subf %9, %8 : vector<3x4x4xf32>
    %11 = math.exp %10 : vector<3x4x4xf32>
    %cst_9 = arith.constant 1.000000e+00 : f32
    %12 = vector.broadcast %cst_9 : f32 to vector<3x4x4xf32>
    %13 = arith.addf %12, %11 : vector<3x4x4xf32>
    %14 = math.log %13 : vector<3x4x4xf32>
    %15 = arith.addf %7, %14 : vector<3x4x4xf32>
    %16 = arith.addf %5, %15 : vector<3x4x4xf32>
    %c0_10 = arith.constant 0 : index
    %c0_11 = arith.constant 0 : index
    %c0_12 = arith.constant 0 : index
    %17 = vector.load %arg4[%c0_10, %c0_11, %c0_12] : memref<3x4x4xf32, #tpu.memory_space<vmem>>, vector<3x4x4xf32>
    tpu.vector_store %arg4[%c0_10, %c0_11, %c0_12], %16 {strides = array<i32>} : memref<3x4x4xf32, #tpu.memory_space<vmem>>, vector<3x4x4xf32>,
    %c0_13 = arith.constant 0 : index
    %c0_14 = arith.constant 0 : index
    %c0_15 = arith.constant 0 : index
    %c0_16 = arith.constant 0 : index
    %c0_17 = arith.constant 0 : index
    %18 = vector.load %arg2[%c0_13, %c0_14, %c0_15, %c0_16, %c0_17] : memref<1x3x1x8x8xf32, #tpu.memory_space<vmem>>, vector<1x3x1x8x8xf32>
    %19 = vector.shape_cast %18 : vector<1x3x1x8x8xf32> to vector<3x8x8xf32>
    %c0_18 = arith.constant 0 : index
    %c0_19 = arith.constant 0 : index
    %c0_20 = arith.constant 0 : index
    %20 = vector.load %arg5[%c0_18, %c0_19, %c0_20] : memref<3x8x8xf32, #tpu.memory_space<vmem>>, vector<3x8x8xf32>
    %cst_21 = arith.constant 0.000000e+00 : f32
    %21 = vector.broadcast %cst_21 : f32 to vector<3x8x8xf32>
    %22 = arith.maximumf %19, %21 : vector<3x8x8xf32>
    %23 = math.absf %19 : vector<3x8x8xf32>
    %cst_22 = arith.constant 0.000000e+00 : f32
    %24 = vector.broadcast %cst_22 : f32 to vector<3x8x8xf32>
    %25 = arith.subf %24, %23 : vector<3x8x8xf32>
    %26 = math.exp %25 : vector<3x8x8xf32>
    %cst_23 = arith.constant 1.000000e+00 : f32
    %27 = vector.broadcast %cst_23 : f32 to vector<3x8x8xf32>
    %28 = arith.addf %27, %26 : vector<3x8x8xf32>
    %29 = math.log %28 : vector<3x8x8xf32>
    %30 = arith.addf %22, %29 : vector<3x8x8xf32>
    %31 = arith.addf %20, %30 : vector<3x8x8xf32>
    %c0_24 = arith.constant 0 : index
    %c0_25 = arith.constant 0 : index
    %c0_26 = arith.constant 0 : index
    %32 = vector.load %arg5[%c0_24, %c0_25, %c0_26] : memref<3x8x8xf32, #tpu.memory_space<vmem>>, vector<3x8x8xf32>
    tpu.vector_store %arg5[%c0_24, %c0_25, %c0_26], %31 {strides = array<i32>} : memref<3x8x8xf32, #tpu.memory_space<vmem>>, vector<3x8x8xf32>,
    %c0_27 = arith.constant 0 : index
    %c0_28 = arith.constant 0 : index
    %c0_29 = arith.constant 0 : index
    %c0_30 = arith.constant 0 : index
    %c0_31 = arith.constant 0 : index
    %33 = vector.load %arg3[%c0_27, %c0_28, %c0_29, %c0_30, %c0_31] : memref<1x3x1x16x16xf32, #tpu.memory_space<vmem>>, vector<1x3x1x16x16xf32>
    %34 = vector.shape_cast %33 : vector<1x3x1x16x16xf32> to vector<3x16x16xf32>
    %c0_32 = arith.constant 0 : index
    %c0_33 = arith.constant 0 : index
    %c0_34 = arith.constant 0 : index
    %35 = vector.load %arg6[%c0_32, %c0_33, %c0_34] : memref<3x16x16xf32, #tpu.memory_space<vmem>>, vector<3x16x16xf32>
    %cst_35 = arith.constant 0.000000e+00 : f32
    %36 = vector.broadcast %cst_35 : f32 to vector<3x16x16xf32>
    %37 = arith.maximumf %34, %36 : vector<3x16x16xf32>
    %38 = math.absf %34 : vector<3x16x16xf32>
    %cst_36 = arith.constant 0.000000e+00 : f32
    %39 = vector.broadcast %cst_36 : f32 to vector<3x16x16xf32>
    %40 = arith.subf %39, %38 : vector<3x16x16xf32>
    %41 = math.exp %40 : vector<3x16x16xf32>
    %cst_37 = arith.constant 1.000000e+00 : f32
    %42 = vector.broadcast %cst_37 : f32 to vector<3x16x16xf32>
    %43 = arith.addf %42, %41 : vector<3x16x16xf32>
    %44 = math.log %43 : vector<3x16x16xf32>
    %45 = arith.addf %37, %44 : vector<3x16x16xf32>
    %46 = arith.addf %35, %45 : vector<3x16x16xf32>
    %c0_38 = arith.constant 0 : index
    %c0_39 = arith.constant 0 : index
    %c0_40 = arith.constant 0 : index
    %47 = vector.load %arg6[%c0_38, %c0_39, %c0_40] : memref<3x16x16xf32, #tpu.memory_space<vmem>>, vector<3x16x16xf32>
    tpu.vector_store %arg6[%c0_38, %c0_39, %c0_40], %46 {strides = array<i32>} : memref<3x16x16xf32, #tpu.memory_space<vmem>>, vector<3x16x16xf32>,
    return
  }
  func.func @transform_0(%arg0: i32) -> (i32, i32, i32, i32, i32) {
    %c0_i32 = arith.constant 0 : i32
    %c4_i32 = arith.constant 4 : i32
    %c0_i32_0 = arith.constant 0 : i32
    %c0_i32_1 = arith.constant 0 : i32
    %c0_i32_2 = arith.constant 0 : i32
    return %arg0, %c0_i32, %c4_i32, %c0_i32_0, %c0_i32_1 : i32, i32, i32, i32, i32
  }
  func.func @transform_1(%arg0: i32) -> (i32, i32, i32, i32, i32) {
    %c0_i32 = arith.constant 0 : i32
    %c4_i32 = arith.constant 4 : i32
    %c0_i32_0 = arith.constant 0 : i32
    %c0_i32_1 = arith.constant 0 : i32
    %c0_i32_2 = arith.constant 0 : i32
    return %arg0, %c0_i32, %c4_i32, %c0_i32_0, %c0_i32_1 : i32, i32, i32, i32, i32
  }
  func.func @transform_2(%arg0: i32) -> (i32, i32, i32, i32, i32) {
    %c0_i32 = arith.constant 0 : i32
    %c4_i32 = arith.constant 4 : i32
    %c0_i32_0 = arith.constant 0 : i32
    %c0_i32_1 = arith.constant 0 : i32
    %c0_i32_2 = arith.constant 0 : i32
    return %arg0, %c0_i32, %c4_i32, %c0_i32_0, %c0_i32_1 : i32, i32, i32, i32, i32
  }
  func.func @transform_3(%arg0: i32) -> (i32, i32, i32) {
    %c0_i32 = arith.constant 0 : i32
    %c0_i32_0 = arith.constant 0 : i32
    %c0_i32_1 = arith.constant 0 : i32
    %c0_i32_2 = arith.constant 0 : i32
    return %c0_i32, %c0_i32_0, %c0_i32_1 : i32, i32, i32
  }
  func.func @transform_4(%arg0: i32) -> (i32, i32, i32) {
    %c0_i32 = arith.constant 0 : i32
    %c0_i32_0 = arith.constant 0 : i32
    %c0_i32_1 = arith.constant 0 : i32
    %c0_i32_2 = arith.constant 0 : i32
    return %c0_i32, %c0_i32_0, %c0_i32_1 : i32, i32, i32
  }
  func.func @transform_5(%arg0: i32) -> (i32, i32, i32) {
    %c0_i32 = arith.constant 0 : i32
    %c0_i32_0 = arith.constant 0 : i32
    %c0_i32_1 = arith.constant 0 : i32
    %c0_i32_2 = arith.constant 0 : i32
    return %c0_i32, %c0_i32_0, %c0_i32_1 : i32, i32, i32
  }
}

</mosaic_0001>

<llo_original>
// kernel: tpu_custom_call.1
$region0: #{tpu_custom_call.1}
  #allocation0 [shape = 'u32[]', space=smem, size = 0x4, offset = 0x4, fixed_abs, tag = 'smem constant byte address 0x4 - core index']
  #allocation1 [shape = 'u32[144,128]{1,0:T(1,128)}', space=vmem, size = 0x12000, scoped, tag = 'internal scratch']
  %s0 = inlined_call_operand.vmem [shape: f32[2,3,13,4,4], index: 0, kind: input, shape index: {}]
  %s1 = inlined_call_operand.vmem [shape: f32[2,3,13,8,8], index: 1, kind: input, shape index: {}]
  %s2 = inlined_call_operand.vmem [shape: f32[2,3,13,16,16], index: 2, kind: input, shape index: {}]
  %s3 = inlined_call_operand.hbm [shape: f32[3,4,4], index: 3, kind: output, shape index: {0}]
  %s4 = inlined_call_operand.hbm [shape: f32[3,8,8], index: 4, kind: output, shape index: {1}]
  %s5 = inlined_call_operand.hbm [shape: f32[3,16,16], index: 5, kind: output, shape index: {2}]
  %6 = xla_tuple %s3, %s4, %s5
  %s7 = sld [smem:[#allocation0]]
  $region182: #{tpu_custom_call.1} parent=0
    _
  %s9 = ssub.s32 1, %s7
  %s10 = scalar_select 0, %s9, %s7
  $region1: #{tpu_custom_call.1} parent=0
    #allocation2 [shape = 'u8[12288]{0}', space=vmem, size = 0x3000, scoped, tag = 'input window, operand 0']
    #allocation3 [shape = 'u8[24576]{0}', space=vmem, size = 0x6000, scoped, tag = 'input window, operand 1']
    #allocation4 [shape = 'u8[49152]{0}', space=vmem, size = 0xc000, scoped, tag = 'input window, operand 2']
    #allocation5 [shape = 'u8[6144]{0}', space=vmem, size = 0x1800, scoped, tag = 'output window, operand 0, single buffered']
    #allocation6 [shape = 's32[2]{0}', space=sflag, size = 0x8, scoped, tag = 'scoped memory for tpu_custom_call.1']
    #allocation7 [shape = 'u8[12288]{0}', space=vmem, size = 0x3000, scoped, tag = 'output window, operand 1, single buffered']
    #allocation8 [shape = 's32[1]{0}', space=sflag, size = 0x4, scoped, tag = 'scoped memory for tpu_custom_call.1']
    #allocation9 [shape = 'u8[24576]{0}', space=vmem, size = 0x6000, scoped, tag = 'output window, operand 2, single buffered']
    %11 = vsyncpa [#allocation6], 0
    %12 = vsyncpa [#allocation8], 0
    loop: start=0, step=1, limit=4
    $region2: #{tpu_custom_call.1} parent=1 // loop_pre_header
      _
    $region3: #{tpu_custom_call.1} parent=1 // loop_header
      %s14 = sphi 0, %s18
      %p15 = scmp.ge.s32.totalorder %s14, 4
      %s24 = sphi 0, %s26
      %s27 = sphi 0, %s24
      %s28 = sphi 0, %s27
      %s44 = sphi 0, %s28
      %s50 = sphi 0, %s52
      %s53 = sphi 0, %s50
      %s54 = sphi 0, %s53
      %s70 = sphi 0, %s54
      %s76 = sphi 0, %s78
      %s79 = sphi 0, %s76
      %s80 = sphi 0, %s79
      %s96 = sphi 0, %s80
      %s100 = sphi 0, %s100
      %s102 = sphi 0, %s100
      %s103 = sphi 0, %s102
      %s117 = sphi 0, %s103
      %s121 = sphi 0, %s121
      %s123 = sphi 0, %s121
      %s124 = sphi 0, %s123
      %s138 = sphi 0, %s124
      %s142 = sphi 0, %s142
      %s144 = sphi 0, %s142
      %s145 = sphi 0, %s144
      %s159 = sphi 0, %s145
    $region4: #{tpu_custom_call.1} parent=1 // loop_header_branch
      %17 = sbr.rel (%p15) target = $region8
    $region5: #{tpu_custom_call.1} parent=1 // loop_body
      %s19 = ssub.s32 %s14, 1
      %s20 = ssub.s32 %s14, 2
      %s21 = sadd.s32 %s14, 1
      %s22 = ssub.s32 %s14, %s21
      %p23 = scmp.eq.s32.totalorder %s22, 0
      %s25 = sadd.s32 %s24, 1
      %s26 = scalar_select %p23, %s24, %s25
      %p29 = pneg %p23
      %p30 = scmp.eq.s32.totalorder %s14, 1
      %p31 = por %p29, %p30
      %p32 = scmp.ne.s32.totalorder %s24, %s27
      %p33 = scmp.eq.s32.totalorder %s14, 0
      %p34 = por %p32, %p33
      %p35 = scmp.ne.s32.totalorder %s24, %s27
      %p36 = scmp.eq.s32.totalorder %s19, 1
      %p37 = por %p35, %p36
      %p38 = scmp.ne.s32.totalorder %s27, %s28
      %p39 = scmp.eq.s32.totalorder %s19, 0
      %p40 = por %p38, %p39
      %p41 = scmp.ne.s32.totalorder %s27, %s28
      %p42 = scmp.eq.s32.totalorder %s20, 1
      %p43 = por %p41, %p42
      %p45 = scmp.ne.s32.totalorder %s28, %s44
      %p46 = scmp.eq.s32.totalorder %s20, 0
      %p47 = por %p45, %p46
      %s48 = ssub.s32 %s14, %s21
      %p49 = scmp.eq.s32.totalorder %s48, 0
      %s51 = sadd.s32 %s50, 1
      %s52 = scalar_select %p49, %s50, %s51
      %p55 = pneg %p49
      %p56 = scmp.eq.s32.totalorder %s14, 1
      %p57 = por %p55, %p56
      %p58 = scmp.ne.s32.totalorder %s50, %s53
      %p59 = scmp.eq.s32.totalorder %s14, 0
      %p60 = por %p58, %p59
      %p61 = scmp.ne.s32.totalorder %s50, %s53
      %p62 = scmp.eq.s32.totalorder %s19, 1
      %p63 = por %p61, %p62
      %p64 = scmp.ne.s32.totalorder %s53, %s54
      %p65 = scmp.eq.s32.totalorder %s19, 0
      %p66 = por %p64, %p65
      %p67 = scmp.ne.s32.totalorder %s53, %s54
      %p68 = scmp.eq.s32.totalorder %s20, 1
      %p69 = por %p67, %p68
      %p71 = scmp.ne.s32.totalorder %s54, %s70
      %p72 = scmp.eq.s32.totalorder %s20, 0
      %p73 = por %p71, %p72
      %s74 = ssub.s32 %s14, %s21
      %p75 = scmp.eq.s32.totalorder %s74, 0
      %s77 = sadd.s32 %s76, 1
      %s78 = scalar_select %p75, %s76, %s77
      %p81 = pneg %p75
      %p82 = scmp.eq.s32.totalorder %s14, 1
      %p83 = por %p81, %p82
      %p84 = scmp.ne.s32.totalorder %s76, %s79
      %p85 = scmp.eq.s32.totalorder %s14, 0
      %p86 = por %p84, %p85
      %p87 = scmp.ne.s32.totalorder %s76, %s79
      %p88 = scmp.eq.s32.totalorder %s19, 1
      %p89 = por %p87, %p88
      %p90 = scmp.ne.s32.totalorder %s79, %s80
      %p91 = scmp.eq.s32.totalorder %s19, 0
      %p92 = por %p90, %p91
      %p93 = scmp.ne.s32.totalorder %s79, %s80
      %p94 = scmp.eq.s32.totalorder %s20, 1
      %p95 = por %p93, %p94
      %p97 = scmp.ne.s32.totalorder %s80, %s96
      %p98 = scmp.eq.s32.totalorder %s20, 0
      %p99 = por %p97, %p98
      %s101 = sadd.s32 %s100, 1
      %p104 = scmp.eq.s32.totalorder %s14, 1
      %p105 = scmp.ne.s32.totalorder %s100, %s102
      %p106 = scmp.eq.s32.totalorder %s14, 0
      %p107 = por %p105, %p106
      %p108 = scmp.ne.s32.totalorder %s100, %s102
      %p109 = scmp.eq.s32.totalorder %s19, 1
      %p110 = por %p108, %p109
      %p111 = scmp.ne.s32.totalorder %s102, %s103
      %p112 = scmp.eq.s32.totalorder %s19, 0
      %p113 = por %p111, %p112
      %p114 = scmp.ne.s32.totalorder %s102, %s103
      %p115 = scmp.eq.s32.totalorder %s20, 1
      %p116 = por %p114, %p115
      %p118 = scmp.ne.s32.totalorder %s103, %s117
      %p119 = scmp.eq.s32.totalorder %s20, 0
      %p120 = por %p118, %p119
      %s122 = sadd.s32 %s121, 1
      %p125 = scmp.eq.s32.totalorder %s14, 1
      %p126 = scmp.ne.s32.totalorder %s121, %s123
      %p127 = scmp.eq.s32.totalorder %s14, 0
      %p128 = por %p126, %p127
      %p129 = scmp.ne.s32.totalorder %s121, %s123
      %p130 = scmp.eq.s32.totalorder %s19, 1
      %p131 = por %p129, %p130
      %p132 = scmp.ne.s32.totalorder %s123, %s124
      %p133 = scmp.eq.s32.totalorder %s19, 0
      %p134 = por %p132, %p133
      %p135 = scmp.ne.s32.totalorder %s123, %s124
      %p136 = scmp.eq.s32.totalorder %s20, 1
      %p137 = por %p135, %p136
      %p139 = scmp.ne.s32.totalorder %s124, %s138
      %p140 = scmp.eq.s32.totalorder %s20, 0
      %p141 = por %p139, %p140
      %s143 = sadd.s32 %s142, 1
      %p146 = scmp.eq.s32.totalorder %s14, 1
      %p147 = scmp.ne.s32.totalorder %s142, %s144
      %p148 = scmp.eq.s32.totalorder %s14, 0
      %p149 = por %p147, %p148
      %p150 = scmp.ne.s32.totalorder %s142, %s144
      %p151 = scmp.eq.s32.totalorder %s19, 1
      %p152 = por %p150, %p151
      %p153 = scmp.ne.s32.totalorder %s144, %s145
      %p154 = scmp.eq.s32.totalorder %s19, 0
      %p155 = por %p153, %p154
      %p156 = scmp.ne.s32.totalorder %s144, %s145
      %p157 = scmp.eq.s32.totalorder %s20, 1
      %p158 = por %p156, %p157
      %p160 = scmp.ne.s32.totalorder %s145, %s159
      %p161 = scmp.eq.s32.totalorder %s20, 0
      %p162 = por %p160, %p161
      %p163 = scmp.le.s32.totalorder 1, %s14
      %p164 = scmp.lt.s32.totalorder %s14, 3
      %p165 = pnand %p163, %p164
      %p166 = pneg %p165
      // Predicated region
      $region9: #{tpu_custom_call.1} parent=5 // pred_check
        _
      $region10: #{tpu_custom_call.1} parent=5 // pred_check_branch
        %168 = sbr.rel (%p165) target = $region12
      $region11: #{tpu_custom_call.1} parent=5 // pred_region
        %s169 = ssub.s32 %s14, 1
      $region12: #{tpu_custom_call.1} parent=5 // pred_fallthru
        _
      %p170 = scmp.lt.s32.totalorder %s14, 2
      // Predicated region
      $region13: #{tpu_custom_call.1} parent=5 // pred_check
        %p171 = pneg %p170
      $region14: #{tpu_custom_call.1} parent=5 // pred_check_branch
        %173 = sbr.rel (%p171) target = $region16
      $region15: #{tpu_custom_call.1} parent=5 // pred_region
        // Predicated region
        $region17: #{tpu_custom_call.1} parent=15 // pred_check
          %p174 = pneg %p34
        $region18: #{tpu_custom_call.1} parent=15 // pred_check_branch
          %176 = sbr.rel (%p174) target = $region20
        $region19: #{tpu_custom_call.1} parent=15 // pred_region
          %s177 = sand.u32 %s24, 1
          %s178 = sand.u32 %s24, 1
          %s179 = smul.addr %s178, 12
          %s180 = scalar_lea.vmem [#allocation2], %s179
          %s181 = smul.addr %s14, 39
          %s182 = sadd.s32 4, %s181
          %s183 = smul.addr %s182, 4
          %s184 = scalar_lea.vmem %s0, %s183
          // Predicated region
          $region21: #{tpu_custom_call.1} parent=19 // pred_check
            _
          $region22: #{tpu_custom_call.1} parent=19 // pred_check_branch
            %186 = sbr.rel (0) target = $region24
          $region23: #{tpu_custom_call.1} parent=19 // pred_region
            // Predicated region
            $region25: #{tpu_custom_call.1} parent=23 // pred_check
              _
            $region26: #{tpu_custom_call.1} parent=23 // pred_check_branch
              %188 = sbr.rel target = $region28
            $region27: #{tpu_custom_call.1} parent=23 // pred_region
              // Predicated region
              $region40: #{tpu_custom_call.1} parent=27 // pred_check
                _
              $region41: #{tpu_custom_call.1} parent=27 // pred_check_branch
                %208 = sbr.rel (0) target = $region43
              $region42: #{tpu_custom_call.1} parent=27 // pred_region
                loop: start=0, step=1, limit=1
                $region44: #{tpu_custom_call.1} parent=42 // loop_pre_header
                  _
                $region45: #{tpu_custom_call.1} parent=42 // loop_header
                  %s210 = sphi 0, %s214
                  %p211 = scmp.ge.s32.totalorder %s210, 1
                  %s215 = sphi %s184, %s184
                  %s216 = sphi %s180, %s180
                $region46: #{tpu_custom_call.1} parent=42 // loop_header_branch
                  %213 = sbr.rel (%p211) target = $region50
                $region47: #{tpu_custom_call.1} parent=42 // loop_body
                  _
                $region48: #{tpu_custom_call.1} parent=42 // loop_footer
                  %s214 = sadd.s32 1, %s210
                $region49: #{tpu_custom_call.1} parent=42 // loop_footer_branch
                  %209 = sbr.rel target = $region45
                $region50: #{tpu_custom_call.1} parent=42 // loop_exit
                  _
                %s218 = ssub.s32 16, 1
                loop: start=0, step=1, limit=1
                $region51: #{tpu_custom_call.1} parent=42 // loop_pre_header
                  _
                $region52: #{tpu_custom_call.1} parent=42 // loop_header
                  %s220 = sphi 0, %s224
                  %p221 = scmp.ge.s32.totalorder %s220, 1
                  %s225 = sphi %s184, %s184
                  %s226 = sphi %s180, %s180
                $region53: #{tpu_custom_call.1} parent=42 // loop_header_branch
                  %223 = sbr.rel (%p221) target = $region57
                $region54: #{tpu_custom_call.1} parent=42 // loop_body
                  %v227 = vld [vmem:[%s225] sm:%s218]
                  %228 = vst [vmem:[%s226] sm:%s218] %v227
                  %v229 = vld [vmem:[%s225 + $0x34] sm:%s218]
                  %230 = vst [vmem:[%s226 + $0x4] sm:%s218] %v229
                  %v231 = vld [vmem:[%s225 + $0x68] sm:%s218]
                  %232 = vst [vmem:[%s226 + $0x8] sm:%s218] %v231
                $region55: #{tpu_custom_call.1} parent=42 // loop_footer
                  %s224 = sadd.s32 1, %s220
                $region56: #{tpu_custom_call.1} parent=42 // loop_footer_branch
                  %219 = sbr.rel target = $region52
                $region57: #{tpu_custom_call.1} parent=42 // loop_exit
                  _
              $region43: #{tpu_custom_call.1} parent=27 // pred_fallthru
                _
            $region28: #{tpu_custom_call.1} parent=23 // pred_fallthru
              _
            // Predicated region
            $region29: #{tpu_custom_call.1} parent=23 // pred_check
              _
            $region30: #{tpu_custom_call.1} parent=23 // pred_check_branch
              %190 = sbr.rel (0) target = $region32
            $region31: #{tpu_custom_call.1} parent=23 // pred_region
              %s192 = ssub.s32 16, 1
              loop: start=0, step=1, limit=1
              $region33: #{tpu_custom_call.1} parent=31 // loop_pre_header
                _
              $region34: #{tpu_custom_call.1} parent=31 // loop_header
                %s194 = sphi 0, %s198
                %p195 = scmp.ge.s32.totalorder %s194, 1
                %s199 = sphi %s184, %s184
                %s200 = sphi %s180, %s180
              $region35: #{tpu_custom_call.1} parent=31 // loop_header_branch
                %197 = sbr.rel (%p195) target = $region39
              $region36: #{tpu_custom_call.1} parent=31 // loop_body
                %v201 = vld [vmem:[%s199] sm:%s192]
                %202 = vst [vmem:[%s200] sm:%s192] %v201
                %v203 = vld [vmem:[%s199 + $0x34] sm:%s192]
                %204 = vst [vmem:[%s200 + $0x4] sm:%s192] %v203
                %v205 = vld [vmem:[%s199 + $0x68] sm:%s192]
                %206 = vst [vmem:[%s200 + $0x8] sm:%s192] %v205
              $region37: #{tpu_custom_call.1} parent=31 // loop_footer
                %s198 = sadd.s32 1, %s194
              $region38: #{tpu_custom_call.1} parent=31 // loop_footer_branch
                %193 = sbr.rel target = $region34
              $region39: #{tpu_custom_call.1} parent=31 // loop_exit
                _
            $region32: #{tpu_custom_call.1} parent=23 // pred_fallthru
              _
          $region24: #{tpu_custom_call.1} parent=19 // pred_fallthru
            _
          %233 = vnop
        $region20: #{tpu_custom_call.1} parent=15 // pred_fallthru
          _
        // Predicated region
        $region58: #{tpu_custom_call.1} parent=15 // pred_check
          %p234 = pneg %p60
        $region59: #{tpu_custom_call.1} parent=15 // pred_check_branch
          %236 = sbr.rel (%p234) target = $region61
        $region60: #{tpu_custom_call.1} parent=15 // pred_region
          %s237 = sand.u32 %s50, 1
          %s238 = sand.u32 %s50, 1
          %s239 = smul.addr %s238, 24
          %s240 = scalar_lea.vmem [#allocation3], %s239
          %s241 = smul.addr %s14, 39
          %s242 = sadd.s32 4, %s241
          %s243 = smul.addr %s242, 8
          %s244 = scalar_lea.vmem %s1, %s243
          // Predicated region
          $region62: #{tpu_custom_call.1} parent=60 // pred_check
            _
          $region63: #{tpu_custom_call.1} parent=60 // pred_check_branch
            %246 = sbr.rel (0) target = $region65
          $region64: #{tpu_custom_call.1} parent=60 // pred_region
            // Predicated region
            $region66: #{tpu_custom_call.1} parent=64 // pred_check
              _
            $region67: #{tpu_custom_call.1} parent=64 // pred_check_branch
              %248 = sbr.rel (0) target = $region69
            $region68: #{tpu_custom_call.1} parent=64 // pred_region
              // Predicated region
              $region81: #{tpu_custom_call.1} parent=68 // pred_check
                _
              $region82: #{tpu_custom_call.1} parent=68 // pred_check_branch
                %268 = sbr.rel (0) target = $region84
              $region83: #{tpu_custom_call.1} parent=68 // pred_region
                loop: start=0, step=1, limit=1
                $region85: #{tpu_custom_call.1} parent=83 // loop_pre_header
                  _
                $region86: #{tpu_custom_call.1} parent=83 // loop_header
                  %s270 = sphi 0, %s274
                  %p271 = scmp.ge.s32.totalorder %s270, 1
                  %s275 = sphi %s244, %s244
                  %s276 = sphi %s240, %s240
                $region87: #{tpu_custom_call.1} parent=83 // loop_header_branch
                  %273 = sbr.rel (%p271) target = $region91
                $region88: #{tpu_custom_call.1} parent=83 // loop_body
                  %v277 = vld [vmem:[%s275] sm:$0xff]
                  %278 = vst [vmem:[%s276] sm:$0xff] %v277
                  %v279 = vld [vmem:[%s275 + $0x68] sm:$0xff]
                  %280 = vst [vmem:[%s276 + $0x8] sm:$0xff] %v279
                  %v281 = vld [vmem:[%s275 + $0xd0] sm:$0xff]
                  %282 = vst [vmem:[%s276 + $0x10] sm:$0xff] %v281
                $region89: #{tpu_custom_call.1} parent=83 // loop_footer
                  %s274 = sadd.s32 1, %s270
                $region90: #{tpu_custom_call.1} parent=83 // loop_footer_branch
                  %269 = sbr.rel target = $region86
                $region91: #{tpu_custom_call.1} parent=83 // loop_exit
                  _
              $region84: #{tpu_custom_call.1} parent=68 // pred_fallthru
                _
              // Predicated region
              $region92: #{tpu_custom_call.1} parent=68 // pred_check
                _
              $region93: #{tpu_custom_call.1} parent=68 // pred_check_branch
                %284 = sbr.rel target = $region95
              $region94: #{tpu_custom_call.1} parent=68 // pred_region
                _
              $region95: #{tpu_custom_call.1} parent=68 // pred_fallthru
                _
            $region69: #{tpu_custom_call.1} parent=64 // pred_fallthru
              _
            // Predicated region
            $region70: #{tpu_custom_call.1} parent=64 // pred_check
              _
            $region71: #{tpu_custom_call.1} parent=64 // pred_check_branch
              %250 = sbr.rel target = $region73
            $region72: #{tpu_custom_call.1} parent=64 // pred_region
              %s252 = ssub.s32 256, 1
              loop: start=0, step=1, limit=1
              $region74: #{tpu_custom_call.1} parent=72 // loop_pre_header
                _
              $region75: #{tpu_custom_call.1} parent=72 // loop_header
                %s254 = sphi 0, %s258
                %p255 = scmp.ge.s32.totalorder %s254, 1
                %s259 = sphi %s244, %s244
                %s260 = sphi %s240, %s240
              $region76: #{tpu_custom_call.1} parent=72 // loop_header_branch
                %257 = sbr.rel (%p255) target = $region80
              $region77: #{tpu_custom_call.1} parent=72 // loop_body
                %v261 = vld [vmem:[%s259] sm:%s252]
                %262 = vst [vmem:[%s260] sm:%s252] %v261
                %v263 = vld [vmem:[%s259 + $0x68] sm:%s252]
                %264 = vst [vmem:[%s260 + $0x8] sm:%s252] %v263
                %v265 = vld [vmem:[%s259 + $0xd0] sm:%s252]
                %266 = vst [vmem:[%s260 + $0x10] sm:%s252] %v265
              $region78: #{tpu_custom_call.1} parent=72 // loop_footer
                %s258 = sadd.s32 1, %s254
              $region79: #{tpu_custom_call.1} parent=72 // loop_footer_branch
                %253 = sbr.rel target = $region75
              $region80: #{tpu_custom_call.1} parent=72 // loop_exit
                _
            $region73: #{tpu_custom_call.1} parent=64 // pred_fallthru
              _
          $region65: #{tpu_custom_call.1} parent=60 // pred_fallthru
            _
          %285 = vnop
        $region61: #{tpu_custom_call.1} parent=15 // pred_fallthru
          _
        // Predicated region
        $region96: #{tpu_custom_call.1} parent=15 // pred_check
          %p286 = pneg %p86
        $region97: #{tpu_custom_call.1} parent=15 // pred_check_branch
          %288 = sbr.rel (%p286) target = $region99
        $region98: #{tpu_custom_call.1} parent=15 // pred_region
          %s289 = sand.u32 %s76, 1
          %s290 = sand.u32 %s76, 1
          %s291 = smul.addr %s290, 48
          %s292 = scalar_lea.vmem [#allocation4], %s291
          %s293 = smul.addr %s14, 78
          %s294 = sadd.s32 8, %s293
          %s295 = smul.addr %s294, 8
          %s296 = scalar_lea.vmem %s2, %s295
          // Predicated region
          $region100: #{tpu_custom_call.1} parent=98 // pred_check
            _
          $region101: #{tpu_custom_call.1} parent=98 // pred_check_branch
            %298 = sbr.rel (0) target = $region103
          $region102: #{tpu_custom_call.1} parent=98 // pred_region
            // Predicated region
            $region104: #{tpu_custom_call.1} parent=102 // pred_check
              _
            $region105: #{tpu_custom_call.1} parent=102 // pred_check_branch
              %300 = sbr.rel (0) target = $region107
            $region106: #{tpu_custom_call.1} parent=102 // pred_region
              // Predicated region
              $region119: #{tpu_custom_call.1} parent=106 // pred_check
                _
              $region120: #{tpu_custom_call.1} parent=106 // pred_check_branch
                %326 = sbr.rel (0) target = $region122
              $region121: #{tpu_custom_call.1} parent=106 // pred_region
                loop: start=0, step=1, limit=1
                $region123: #{tpu_custom_call.1} parent=121 // loop_pre_header
                  _
                $region124: #{tpu_custom_call.1} parent=121 // loop_header
                  %s328 = sphi 0, %s332
                  %p329 = scmp.ge.s32.totalorder %s328, 1
                  %s333 = sphi %s296, %s296
                  %s334 = sphi %s292, %s292
                $region125: #{tpu_custom_call.1} parent=121 // loop_header_branch
                  %331 = sbr.rel (%p329) target = $region129
                $region126: #{tpu_custom_call.1} parent=121 // loop_body
                  %v335 = vld [vmem:[%s333] sm:$0xff]
                  %336 = vst [vmem:[%s334] sm:$0xff] %v335
                  %v337 = vld [vmem:[%s333 + $0x8] sm:$0xff]
                  %338 = vst [vmem:[%s334 + $0x8] sm:$0xff] %v337
                  %v339 = vld [vmem:[%s333 + $0xd0] sm:$0xff]
                  %340 = vst [vmem:[%s334 + $0x10] sm:$0xff] %v339
                  %v341 = vld [vmem:[%s333 + $0xd8] sm:$0xff]
                  %342 = vst [vmem:[%s334 + $0x18] sm:$0xff] %v341
                  %v343 = vld [vmem:[%s333 + $0x1a0] sm:$0xff]
                  %344 = vst [vmem:[%s334 + $0x20] sm:$0xff] %v343
                  %v345 = vld [vmem:[%s333 + $0x1a8] sm:$0xff]
                  %346 = vst [vmem:[%s334 + $0x28] sm:$0xff] %v345
                $region127: #{tpu_custom_call.1} parent=121 // loop_footer
                  %s332 = sadd.s32 1, %s328
                $region128: #{tpu_custom_call.1} parent=121 // loop_footer_branch
                  %327 = sbr.rel target = $region124
                $region129: #{tpu_custom_call.1} parent=121 // loop_exit
                  _
              $region122: #{tpu_custom_call.1} parent=106 // pred_fallthru
                _
              // Predicated region
              $region130: #{tpu_custom_call.1} parent=106 // pred_check
                _
              $region131: #{tpu_custom_call.1} parent=106 // pred_check_branch
                %348 = sbr.rel target = $region133
              $region132: #{tpu_custom_call.1} parent=106 // pred_region
                _
              $region133: #{tpu_custom_call.1} parent=106 // pred_fallthru
                _
            $region107: #{tpu_custom_call.1} parent=102 // pred_fallthru
              _
            // Predicated region
            $region108: #{tpu_custom_call.1} parent=102 // pred_check
              _
            $region109: #{tpu_custom_call.1} parent=102 // pred_check_branch
              %302 = sbr.rel target = $region111
            $region110: #{tpu_custom_call.1} parent=102 // pred_region
              %s304 = ssub.s32 256, 1
              loop: start=0, step=1, limit=1
              $region112: #{tpu_custom_call.1} parent=110 // loop_pre_header
                _
              $region113: #{tpu_custom_call.1} parent=110 // loop_header
                %s306 = sphi 0, %s310
                %p307 = scmp.ge.s32.totalorder %s306, 1
                %s311 = sphi %s296, %s296
                %s312 = sphi %s292, %s292
              $region114: #{tpu_custom_call.1} parent=110 // loop_header_branch
                %309 = sbr.rel (%p307) target = $region118
              $region115: #{tpu_custom_call.1} parent=110 // loop_body
                %v313 = vld [vmem:[%s311] sm:%s304]
                %314 = vst [vmem:[%s312] sm:%s304] %v313
                %v315 = vld [vmem:[%s311 + $0x8] sm:%s304]
                %316 = vst [vmem:[%s312 + $0x8] sm:%s304] %v315
                %v317 = vld [vmem:[%s311 + $0xd0] sm:%s304]
                %318 = vst [vmem:[%s312 + $0x10] sm:%s304] %v317
                %v319 = vld [vmem:[%s311 + $0xd8] sm:%s304]
                %320 = vst [vmem:[%s312 + $0x18] sm:%s304] %v319
                %v321 = vld [vmem:[%s311 + $0x1a0] sm:%s304]
                %322 = vst [vmem:[%s312 + $0x20] sm:%s304] %v321
                %v323 = vld [vmem:[%s311 + $0x1a8] sm:%s304]
                %324 = vst [vmem:[%s312 + $0x28] sm:%s304] %v323
              $region116: #{tpu_custom_call.1} parent=110 // loop_footer
                %s310 = sadd.s32 1, %s306
              $region117: #{tpu_custom_call.1} parent=110 // loop_footer_branch
                %305 = sbr.rel target = $region113
              $region118: #{tpu_custom_call.1} parent=110 // loop_exit
                _
            $region111: #{tpu_custom_call.1} parent=102 // pred_fallthru
              _
          $region103: #{tpu_custom_call.1} parent=98 // pred_fallthru
            _
          %349 = vnop
        $region99: #{tpu_custom_call.1} parent=15 // pred_fallthru
          _
      $region16: #{tpu_custom_call.1} parent=5 // pred_fallthru
        _
      %p350 = scmp.le.s32.totalorder 1, %s14
      %p351 = scmp.lt.s32.totalorder %s14, 3
      %p352 = pnand %p350, %p351
      %p353 = pneg %p352
      // Predicated region
      $region134: #{tpu_custom_call.1} parent=5 // pred_check
        _
      $region135: #{tpu_custom_call.1} parent=5 // pred_check_branch
        %355 = sbr.rel (%p352) target = $region137
      $region136: #{tpu_custom_call.1} parent=5 // pred_region
        %s356 = ssub.s32 %s14, 1
        %s357 = sand.u32 %s27, 1
        %s358 = sand.u32 %s27, 1
        %s359 = smul.addr %s358, 12
        %s360 = scalar_lea.vmem [#allocation2], %s359
        // Predicated region
        $region138: #{tpu_custom_call.1} parent=136 // pred_check
          %p361 = pneg %p40
        $region139: #{tpu_custom_call.1} parent=136 // pred_check_branch
          %363 = sbr.rel (%p361) target = $region141
        $region140: #{tpu_custom_call.1} parent=136 // pred_region
          _
        $region141: #{tpu_custom_call.1} parent=136 // pred_fallthru
          _
        %s364 = sand.u32 %s53, 1
        %s365 = sand.u32 %s53, 1
        %s366 = smul.addr %s365, 24
        %s367 = scalar_lea.vmem [#allocation3], %s366
        // Predicated region
        $region142: #{tpu_custom_call.1} parent=136 // pred_check
          %p368 = pneg %p66
        $region143: #{tpu_custom_call.1} parent=136 // pred_check_branch
          %370 = sbr.rel (%p368) target = $region145
        $region144: #{tpu_custom_call.1} parent=136 // pred_region
          _
        $region145: #{tpu_custom_call.1} parent=136 // pred_fallthru
          _
        %s371 = sand.u32 %s79, 1
        %s372 = sand.u32 %s79, 1
        %s373 = smul.addr %s372, 48
        %s374 = scalar_lea.vmem [#allocation4], %s373
        // Predicated region
        $region146: #{tpu_custom_call.1} parent=136 // pred_check
          %p375 = pneg %p92
        $region147: #{tpu_custom_call.1} parent=136 // pred_check_branch
          %377 = sbr.rel (%p375) target = $region149
        $region148: #{tpu_custom_call.1} parent=136 // pred_region
          _
        $region149: #{tpu_custom_call.1} parent=136 // pred_fallthru
          _
        %s378 = sand.u32 %s27, 1
        %s379 = sand.u32 %s27, 1
        %s380 = smul.addr %s379, 12
        %s381 = scalar_lea.vmem [#allocation2], %s380
        %p382 = pneg %p40
        %p383 = pneg %p37
        %s384 = sand.u32 %s53, 1
        %s385 = sand.u32 %s53, 1
        %s386 = smul.addr %s385, 24
        %s387 = scalar_lea.vmem [#allocation3], %s386
        %p388 = pneg %p66
        %p389 = pneg %p63
        %s390 = sand.u32 %s79, 1
        %s391 = sand.u32 %s79, 1
        %s392 = smul.addr %s391, 48
        %s393 = scalar_lea.vmem [#allocation4], %s392
        %p394 = pneg %p92
        %p395 = pneg %p89
        %p396 = pneg %p113
        %p397 = pneg %p110
        %p398 = pneg %p134
        %p399 = pneg %p131
        %p400 = pneg %p155
        %p401 = pneg %p152
        %p402 = scmp.eq.s32.totalorder %s19, 0
        // Predicated region
        $region150: #{tpu_custom_call.1} parent=136 // pred_check
          %p403 = pneg %p402
        $region151: #{tpu_custom_call.1} parent=136 // pred_check_branch
          %405 = sbr.rel (%p403) target = $region153
        $region152: #{tpu_custom_call.1} parent=136 // pred_region
          %vm406 = vcmask 27648
          %407 = vst.msk [vmem:[#allocation5] sm:$0xf] %vm406, 0.0
          %408 = vst.msk [vmem:[#allocation5 + $0x4] sm:$0xf] %vm406, 0.0
          %409 = vst.msk [vmem:[#allocation5 + $0x8] sm:$0xf] %vm406, 0.0
          %vm410 = vcmask 64512
          %411 = vst.msk [vmem:[#allocation7] sm:$0xff] %vm410, 0.0
          %412 = vst.msk [vmem:[#allocation7 + $0x8] sm:$0xff] %vm410, 0.0
          %413 = vst.msk [vmem:[#allocation7 + $0x10] sm:$0xff] %vm410, 0.0
          %vm414 = vcmask 130048
          %415 = vst.msk [vmem:[#allocation9] sm:$0xff] %vm414, 0.0
          %416 = vst.msk [vmem:[#allocation9 + $0x8] sm:$0xff] %vm414, 0.0
          %417 = vst.msk [vmem:[#allocation9 + $0x10] sm:$0xff] %vm414, 0.0
          %418 = vst.msk [vmem:[#allocation9 + $0x18] sm:$0xff] %vm414, 0.0
          %419 = vst.msk [vmem:[#allocation9 + $0x20] sm:$0xff] %vm414, 0.0
          %420 = vst.msk [vmem:[#allocation9 + $0x28] sm:$0xff] %vm414, 0.0
        $region153: #{tpu_custom_call.1} parent=136 // pred_fallthru
          _
        %v421 = vld [vmem:[%s360] sm:$0xf]
        %v422 = vld [vmem:[%s360 + $0x4] sm:$0xf]
        %v423 = vld [vmem:[%s360 + $0x8] sm:$0xf]
        %v424 = vld [vmem:[#allocation5] sm:$0xf]
        %v425 = vld [vmem:[#allocation5 + $0x4] sm:$0xf]
        %v426 = vld [vmem:[#allocation5 + $0x8] sm:$0xf]
        %v427 = vmax.f32 %v421, 0.0
        %v428 = vmax.f32 %v422, 0.0
        %v429 = vmax.f32 %v423, 0.0
        %v430 = vand.u32 2147483647, %v421
        %v431 = vand.u32 2147483647, %v422
        %v432 = vand.u32 2147483647, %v423
        %v433 = vsub.f32 0.0, %v430
        %v434 = vsub.f32 0.0, %v431
        %v435 = vsub.f32 0.0, %v432
        %v436 = vmul.f32 %v433, 1.442695
        %v437 = vpow.pop %v436
        %v438 = vmul.f32 %v434, 1.442695
        %v439 = vpow.pop %v438
        %v440 = vmul.f32 %v435, 1.442695
        %v441 = vpow.pop %v440
        %v442 = vadd.f32 %v437, 1.0
        %v443 = vadd.f32 %v439, 1.0
        %v444 = vadd.f32 %v441, 1.0
        %v445 = vlog2.pop %v442
        %v446 = vmul.f32 %v445, 0.6931472
        %v447 = vlog2.pop %v443
        %v448 = vmul.f32 %v447, 0.6931472
        %v449 = vlog2.pop %v444
        %v450 = vmul.f32 %v449, 0.6931472
        %v451 = vadd.f32 %v427, %v446
        %v452 = vadd.f32 %v428, %v448
        %v453 = vadd.f32 %v429, %v450
        %v454 = vadd.f32 %v424, %v451
        %v455 = vadd.f32 %v425, %v452
        %v456 = vadd.f32 %v426, %v453
        %vm457 = vcmask 27648
        %458 = vst.msk [vmem:[#allocation5] sm:$0xf] %vm457, %v454
        %459 = vst.msk [vmem:[#allocation5 + $0x4] sm:$0xf] %vm457, %v455
        %460 = vst.msk [vmem:[#allocation5 + $0x8] sm:$0xf] %vm457, %v456
        %v461 = vld [vmem:[%s367] sm:$0xff]
        %v462 = vld [vmem:[%s367 + $0x8] sm:$0xff]
        %v463 = vld [vmem:[%s367 + $0x10] sm:$0xff]
        %v464 = vld [vmem:[#allocation7] sm:$0xff]
        %v465 = vld [vmem:[#allocation7 + $0x8] sm:$0xff]
        %v466 = vld [vmem:[#allocation7 + $0x10] sm:$0xff]
        %v467 = vmax.f32 %v461, 0.0
        %v468 = vmax.f32 %v462, 0.0
        %v469 = vmax.f32 %v463, 0.0
        %v470 = vand.u32 2147483647, %v461
        %v471 = vand.u32 2147483647, %v462
        %v472 = vand.u32 2147483647, %v463
        %v473 = vsub.f32 0.0, %v470
        %v474 = vsub.f32 0.0, %v471
        %v475 = vsub.f32 0.0, %v472
        %v476 = vmul.f32 %v473, 1.442695
        %v477 = vpow.pop %v476
        %v478 = vmul.f32 %v474, 1.442695
        %v479 = vpow.pop %v478
        %v480 = vmul.f32 %v475, 1.442695
        %v481 = vpow.pop %v480
        %v482 = vadd.f32 %v477, 1.0
        %v483 = vadd.f32 %v479, 1.0
        %v484 = vadd.f32 %v481, 1.0
        %v485 = vlog2.pop %v482
        %v486 = vmul.f32 %v485, 0.6931472
        %v487 = vlog2.pop %v483
        %v488 = vmul.f32 %v487, 0.6931472
        %v489 = vlog2.pop %v484
        %v490 = vmul.f32 %v489, 0.6931472
        %v491 = vadd.f32 %v467, %v486
        %v492 = vadd.f32 %v468, %v488
        %v493 = vadd.f32 %v469, %v490
        %v494 = vadd.f32 %v464, %v491
        %v495 = vadd.f32 %v465, %v492
        %v496 = vadd.f32 %v466, %v493
        %vm497 = vcmask 64512
        %498 = vst.msk [vmem:[#allocation7] sm:$0xff] %vm497, %v494
        %499 = vst.msk [vmem:[#allocation7 + $0x8] sm:$0xff] %vm497, %v495
        %500 = vst.msk [vmem:[#allocation7 + $0x10] sm:$0xff] %vm497, %v496
        %v501 = vld [vmem:[%s374] sm:$0xff]
        %v502 = vld [vmem:[%s374 + $0x8] sm:$0xff]
        %v503 = vld [vmem:[%s374 + $0x10] sm:$0xff]
        %v504 = vld [vmem:[%s374 + $0x18] sm:$0xff]
        %v505 = vld [vmem:[%s374 + $0x20] sm:$0xff]
        %v506 = vld [vmem:[%s374 + $0x28] sm:$0xff]
        %v507 = vld [vmem:[#allocation9] sm:$0xff]
        %v508 = vld [vmem:[#allocation9 + $0x8] sm:$0xff]
        %v509 = vld [vmem:[#allocation9 + $0x10] sm:$0xff]
        %v510 = vld [vmem:[#allocation9 + $0x18] sm:$0xff]
        %v511 = vld [vmem:[#allocation9 + $0x20] sm:$0xff]
        %v512 = vld [vmem:[#allocation9 + $0x28] sm:$0xff]
        %v513 = vmax.f32 %v501, 0.0
        %v514 = vmax.f32 %v502, 0.0
        %v515 = vmax.f32 %v503, 0.0
        %v516 = vmax.f32 %v504, 0.0
        %v517 = vmax.f32 %v505, 0.0
        %v518 = vmax.f32 %v506, 0.0
        %v519 = vand.u32 2147483647, %v501
        %v520 = vand.u32 2147483647, %v502
        %v521 = vand.u32 2147483647, %v503
        %v522 = vand.u32 2147483647, %v504
        %v523 = vand.u32 2147483647, %v505
        %v524 = vand.u32 2147483647, %v506
        %v525 = vsub.f32 0.0, %v519
        %v526 = vsub.f32 0.0, %v520
        %v527 = vsub.f32 0.0, %v521
        %v528 = vsub.f32 0.0, %v522
        %v529 = vsub.f32 0.0, %v523
        %v530 = vsub.f32 0.0, %v524
        %v531 = vmul.f32 %v525, 1.442695
        %v532 = vpow.pop %v531
        %v533 = vmul.f32 %v526, 1.442695
        %v534 = vpow.pop %v533
        %v535 = vmul.f32 %v527, 1.442695
        %v536 = vpow.pop %v535
        %v537 = vmul.f32 %v528, 1.442695
        %v538 = vpow.pop %v537
        %v539 = vmul.f32 %v529, 1.442695
        %v540 = vpow.pop %v539
        %v541 = vmul.f32 %v530, 1.442695
        %v542 = vpow.pop %v541
        %v543 = vadd.f32 %v532, 1.0
        %v544 = vadd.f32 %v534, 1.0
        %v545 = vadd.f32 %v536, 1.0
        %v546 = vadd.f32 %v538, 1.0
        %v547 = vadd.f32 %v540, 1.0
        %v548 = vadd.f32 %v542, 1.0
        %v549 = vlog2.pop %v543
        %v550 = vmul.f32 %v549, 0.6931472
        %v551 = vlog2.pop %v544
        %v552 = vmul.f32 %v551, 0.6931472
        %v553 = vlog2.pop %v545
        %v554 = vmul.f32 %v553, 0.6931472
        %v555 = vlog2.pop %v546
        %v556 = vmul.f32 %v555, 0.6931472
        %v557 = vlog2.pop %v547
        %v558 = vmul.f32 %v557, 0.6931472
        %v559 = vlog2.pop %v548
        %v560 = vmul.f32 %v559, 0.6931472
        %v561 = vadd.f32 %v513, %v550
        %v562 = vadd.f32 %v514, %v552
        %v563 = vadd.f32 %v515, %v554
        %v564 = vadd.f32 %v516, %v556
        %v565 = vadd.f32 %v517, %v558
        %v566 = vadd.f32 %v518, %v560
        %v567 = vadd.f32 %v507, %v561
        %v568 = vadd.f32 %v508, %v562
        %v569 = vadd.f32 %v509, %v563
        %v570 = vadd.f32 %v510, %v564
        %v571 = vadd.f32 %v511, %v565
        %v572 = vadd.f32 %v512, %v566
        %vm573 = vcmask 130048
        %574 = vst.msk [vmem:[#allocation9] sm:$0xff] %vm573, %v567
        %575 = vst.msk [vmem:[#allocation9 + $0x8] sm:$0xff] %vm573, %v568
        %576 = vst.msk [vmem:[#allocation9 + $0x10] sm:$0xff] %vm573, %v569
        %577 = vst.msk [vmem:[#allocation9 + $0x18] sm:$0xff] %vm573, %v570
        %578 = vst.msk [vmem:[#allocation9 + $0x20] sm:$0xff] %vm573, %v571
        %579 = vst.msk [vmem:[#allocation9 + $0x28] sm:$0xff] %vm573, %v572
        // Predicated region
        $region154: #{tpu_custom_call.1} parent=136 // pred_check
          %p580 = pneg %p110
        $region155: #{tpu_custom_call.1} parent=136 // pred_check_branch
          %582 = sbr.rel (%p580) target = $region157
        $region156: #{tpu_custom_call.1} parent=136 // pred_region
          %s584 = ssub.s32 192, 192
          %585 = vsyncadd [#allocation6], %s584
          %s586 = sshll.u32 [#allocation5], 4
          %s587 = int_to_ptr.vmem [resolvable:$true] %s586
          %592 = dma.vmem_to_hbm [thread:$0]  %s587, 192, %s3, [#allocation6], 64, 64, 4
        $region157: #{tpu_custom_call.1} parent=136 // pred_fallthru
          _
        // Predicated region
        $region158: #{tpu_custom_call.1} parent=136 // pred_check
          %p593 = pneg %p131
        $region159: #{tpu_custom_call.1} parent=136 // pred_check_branch
          %595 = sbr.rel (%p593) target = $region161
        $region160: #{tpu_custom_call.1} parent=136 // pred_region
          %s597 = ssub.s32 384, 384
          %598 = vsyncadd [#allocation8], %s597
          %s599 = sshll.u32 [#allocation7], 4
          %s600 = int_to_ptr.vmem [resolvable:$true] %s599
          %605 = dma.vmem_to_hbm [thread:$0]  %s600, 384, %s4, [#allocation8], 128, 128, 8
        $region161: #{tpu_custom_call.1} parent=136 // pred_fallthru
          _
        // Predicated region
        $region162: #{tpu_custom_call.1} parent=136 // pred_check
          %p606 = pneg %p152
        $region163: #{tpu_custom_call.1} parent=136 // pred_check_branch
          %608 = sbr.rel (%p606) target = $region165
        $region164: #{tpu_custom_call.1} parent=136 // pred_region
          %s610 = ssub.s32 768, 768
          %611 = vsyncadd [#allocation8], %s610
          %s612 = sshll.u32 [#allocation9], 4
          %s613 = int_to_ptr.vmem [resolvable:$true] %s612
          %618 = dma.vmem_to_hbm [thread:$0]  %s613, 768, %s5, [#allocation8], 128, 128, 8
        $region165: #{tpu_custom_call.1} parent=136 // pred_fallthru
          _
        // Predicated region
        $region166: #{tpu_custom_call.1} parent=136 // pred_check
          %p619 = pneg %p110
        $region167: #{tpu_custom_call.1} parent=136 // pred_check_branch
          %621 = sbr.rel (%p619) target = $region169
        $region168: #{tpu_custom_call.1} parent=136 // pred_region
          %622 = dma.done [#allocation6], 192
        $region169: #{tpu_custom_call.1} parent=136 // pred_fallthru
          _
        // Predicated region
        $region170: #{tpu_custom_call.1} parent=136 // pred_check
          %p623 = pneg %p131
        $region171: #{tpu_custom_call.1} parent=136 // pred_check_branch
          %625 = sbr.rel (%p623) target = $region173
        $region172: #{tpu_custom_call.1} parent=136 // pred_region
          %626 = dma.done [#allocation8], 384
        $region173: #{tpu_custom_call.1} parent=136 // pred_fallthru
          _
        // Predicated region
        $region174: #{tpu_custom_call.1} parent=136 // pred_check
          %p627 = pneg %p152
        $region175: #{tpu_custom_call.1} parent=136 // pred_check_branch
          %629 = sbr.rel (%p627) target = $region177
        $region176: #{tpu_custom_call.1} parent=136 // pred_region
          %630 = dma.done [#allocation8], 768
        $region177: #{tpu_custom_call.1} parent=136 // pred_fallthru
          _
      $region137: #{tpu_custom_call.1} parent=5 // pred_fallthru
        _
      %p631 = scmp.le.s32.totalorder 2, %s14
      // Predicated region
      $region178: #{tpu_custom_call.1} parent=5 // pred_check
        %p632 = pneg %p631
      $region179: #{tpu_custom_call.1} parent=5 // pred_check_branch
        %634 = sbr.rel (%p632) target = $region181
      $region180: #{tpu_custom_call.1} parent=5 // pred_region
        %s635 = ssub.s32 %s14, 2
      $region181: #{tpu_custom_call.1} parent=5 // pred_fallthru
        _
    $region6: #{tpu_custom_call.1} parent=1 // loop_footer
      %s18 = sadd.s32 1, %s14
    $region7: #{tpu_custom_call.1} parent=1 // loop_footer_branch
      %13 = sbr.rel target = $region3
    $region8: #{tpu_custom_call.1} parent=1 // loop_exit
      _
    %636 = vsyncpa [#allocation6], 1
    %s637 = scalar_lea.sflag [#allocation6], 1
    %638 = vsyncpa %s637, 1
    %639 = vsyncpa [#allocation8], 1

</llo_original>
